<compile_context>
chip_gen: v7x
topology: tpu7x:2x2x1
jax: 0.10.0
libtpu: 0.0.40
codegen_flags: <defaults>
</compile_context>

<pallas_src>
import jax
import jax.numpy as jnp
from jax.experimental import pallas as pl
from jax.experimental.pallas import tpu as pltpu  # noqa: F401

# ----------------------------- config ---------------------------------------
B = 2            # batch
C = 4            # image channels
H = W = 16       # image spatial
HW = H * W
S = 8            # question sequence length
VOCAB = 100      # stub vocab for the text-encoder embedding table
TEXT_EMB = 32    # cfg.text_emb_dim (BERT hidden stub)
IMG_OUT = 16     # cfg.image_out_dim (backbone feature dim stub)
IMG_EMB = 32     # cfg.image_emb_dim
FC_HID = 64      # cfg.fc_hidden_dim
LABEL = 10       # number of answer labels
OUT_PAD = 128    # lane-dense output width (>= LABEL, multiple of 128)

# packed-weight row offsets (each section starts on a sublane-aligned row)
R_WIMG = 0                     # [C, FC_HID]        folded (wb @ wi @ wf1i)/HW
R_BH = 8                       # [1, FC_HID]        folded (bb@wi+bi)@wf1i + bf1
R_WTXT = 16                    # [TEXT_EMB, FC_HID] fc1 weight, text half of concat
R_W2 = 48                      # [FC_HID, OUT_PAD]  fc2 weight (zero-padded past LABEL)
R_B2 = 112                     # [1, OUT_PAD]       fc2 bias   (zero-padded past LABEL)
R_EMB = 120                    # [VOCAB, TEXT_EMB]  embedding table (text-encoder stub)
W_ROWS = 224                   # 120 + 100 rounded up to a multiple of 8


# ----------------------------- kernel ---------------------------------------
def vqa_kernel(img_ref,     # [B, C, HW]        image, NCHW with flattened spatial
               ids_ref,     # [B, S]            token ids (int32)
               mask_ref,    # [B, S]            attention mask (float32)
               w_ref,       # [W_ROWS, OUT_PAD] packed constants (head + emb table)
               out_ref):    # [B, OUT_PAD]      lane-dense logits (first LABEL valid)
    # ---- image branch: spatial sum over the lane axis (1/HW folded into W_img)
    img_sum = jnp.sum(img_ref[...], axis=-1)                        # [B, C]

    # ---- text branch: fused embedding gather + masked sum --------------------
    # gather followed by masked sum is linear -> one-hot weighted counts @ table
    ids = ids_ref[...]                                              # [B, S] i32
    mask = mask_ref[...]                                            # [B, S] f32
    iota_v = jax.lax.broadcasted_iota(jnp.int32, (B, S, VOCAB), 2)
    onehot = (ids[:, :, None] == iota_v).astype(jnp.float32)        # [B, S, VOCAB]
    counts = jnp.sum(onehot * mask[:, :, None], axis=1)             # [B, VOCAB]
    emb = w_ref[R_EMB:R_EMB + VOCAB, :TEXT_EMB]                     # [VOCAB, TEXT_EMB]
    masked_sum = jnp.dot(counts, emb,
                         preferred_element_type=jnp.float32)        # [B, TEXT_EMB]
    denom = jnp.maximum(jnp.sum(mask, axis=1, keepdims=True), 1e-9)  # clamp(min=1e-9)
    sent = masked_sum / denom                                       # mean_pooling
    norm = jnp.sqrt(jnp.sum(sent * sent, axis=1, keepdims=True))
    qfeat = sent / jnp.maximum(norm, 1e-12)                         # F.normalize(p=2, dim=1)

    # ---- head: concat(image_feature, question_feature) @ W_fc1 as split sum --
    w_img = w_ref[R_WIMG:R_WIMG + C, :FC_HID]                       # [C, FC_HID]
    w_txt = w_ref[R_WTXT:R_WTXT + TEXT_EMB, :FC_HID]                # [TEXT_EMB, FC_HID]
    b_h = w_ref[R_BH:R_BH + 1, :FC_HID]                             # [1, FC_HID]
    w2 = w_ref[R_W2:R_W2 + FC_HID, :]                               # [FC_HID, OUT_PAD]
    b2 = w_ref[R_B2:R_B2 + 1, :]                                    # [1, OUT_PAD]

    h = (jnp.dot(img_sum, w_img, preferred_element_type=jnp.float32)
         + jnp.dot(qfeat, w_txt, preferred_element_type=jnp.float32)
         + b_h)
    h = jnp.maximum(h, 0.0)                                         # ReLU
    out_ref[...] = jnp.dot(h, w2, preferred_element_type=jnp.float32) + b2


# ----------------------------- param packing --------------------------------
def _dot_hp(a, b):
    return jnp.dot(a, b, precision=jax.lax.Precision.HIGHEST)


def pack_params(p):
    """Fold the affine image chain (+ spatial-mean scale) and pack ALL constants
    (head weights, biases, embedding table) into one [W_ROWS, OUT_PAD] buffer."""
    w_img = _dot_hp(_dot_hp(p["wb"], p["wi"]), p["wf1i"]) / float(HW)         # [C, FC_HID]
    b_h = _dot_hp(_dot_hp(p["bb"], p["wi"]) + p["bi"], p["wf1i"]) + p["bf1"]  # [1, FC_HID]
    packed = jnp.zeros((W_ROWS, OUT_PAD), jnp.float32)
    packed = packed.at[R_WIMG:R_WIMG + C, :FC_HID].set(w_img)
    packed = packed.at[R_BH, :FC_HID].set(b_h[0])
    packed = packed.at[R_WTXT:R_WTXT + TEXT_EMB, :FC_HID].set(p["wf1t"])
    packed = packed.at[R_W2:R_W2 + FC_HID, :LABEL].set(p["wf2"])
    packed = packed.at[R_B2, :LABEL].set(p["bf2"][0])
    packed = packed.at[R_EMB:R_EMB + VOCAB, :TEXT_EMB].set(p["emb_table"])
    return {"w_packed": packed}


# ----------------------------- wrapper ---------------------------------------
def vqa_forward(image_nchw, input_ids, attention_mask, packed):
    """image_nchw: [B,C,H,W] f32; input_ids: [B,S] i32; attention_mask: [B,S]."""
    img = image_nchw.reshape(B, C, HW)          # free reshape (no transpose)
    args = (
        img,
        input_ids.astype(jnp.int32),
        attention_mask.astype(jnp.float32),
        packed["w_packed"],
    )
    # every operand is a few KB -> single grid point, full-array blocks in VMEM
    full_spec = lambda a: pl.BlockSpec(a.shape, lambda: (0,) * a.ndim)
    out_padded = pl.pallas_call(
        vqa_kernel,
        out_shape=jax.ShapeDtypeStruct((B, OUT_PAD), jnp.float32),
        grid=(),
        in_specs=[full_spec(a) for a in args],
        out_specs=pl.BlockSpec((B, OUT_PAD), lambda: (0, 0)),
        cost_estimate=pl.CostEstimate(
            flops=2 * B * (S * VOCAB + VOCAB * TEXT_EMB
                           + (C + TEXT_EMB) * FC_HID + FC_HID * OUT_PAD)
                  + B * C * HW,
            transcendentals=B,
            bytes_accessed=4 * (B * C * HW + 2 * B * S
                                + W_ROWS * OUT_PAD + B * OUT_PAD),
        ),
    )(*args)
    return out_padded[:, :LABEL]


# ----------------------------- reference (pure jnp) ---------------------------
def vqa_reference(image_nchw, input_ids, attention_mask, p):
    img_pool = jnp.mean(image_nchw, axis=(2, 3))                    # [B, C]
    feat = _dot_hp(img_pool, p["wb"]) + p["bb"]                     # backbone stub
    image_feature = _dot_hp(feat, p["wi"]) + p["bi"]                # image projection
    tok = jnp.take(p["emb_table"], input_ids, axis=0)               # [B, S, TEXT_EMB]
    mask = attention_mask.astype(jnp.float32)[:, :, None]
    sent = jnp.sum(tok * mask, axis=1) / jnp.maximum(jnp.sum(mask, axis=1), 1e-9)
    qfeat = sent / jnp.maximum(
        jnp.sqrt(jnp.sum(sent * sent, axis=1, keepdims=True)), 1e-12)
    x = jnp.concatenate([image_feature, qfeat], axis=1)
    wf1 = jnp.concatenate([p["wf1i"], p["wf1t"]], axis=0)
    h = jnp.maximum(_dot_hp(x, wf1) + p["bf1"], 0.0)
    return _dot_hp(h, p["wf2"]) + p["bf2"]


# ----------------------------- params & main ---------------------------------
def init_params(key):
    ks = jax.random.split(key, 8)
    scale = 0.05
    return {
        "emb_table": scale * jax.random.normal(ks[0], (VOCAB, TEXT_EMB), jnp.float32),
        "wb": scale * jax.random.normal(ks[1], (C, IMG_OUT), jnp.float32),
        "bb": jnp.zeros((1, IMG_OUT), jnp.float32),
        "wi": scale * jax.random.normal(ks[2], (IMG_OUT, IMG_EMB), jnp.float32),
        "bi": 0.01 * jnp.ones((1, IMG_EMB), jnp.float32),
        "wf1i": scale * jax.random.normal(ks[3], (IMG_EMB, FC_HID), jnp.float32),
        "wf1t": scale * jax.random.normal(ks[4], (TEXT_EMB, FC_HID), jnp.float32),
        "bf1": 0.01 * jnp.ones((1, FC_HID), jnp.float32),
        "wf2": scale * jax.random.normal(ks[5], (FC_HID, LABEL), jnp.float32),
        "bf2": jnp.zeros((1, LABEL), jnp.float32),
    }


if __name__ == "__main__":
    key = jax.random.PRNGKey(0)
    k_img, k_ids, k_par = jax.random.split(key, 3)

    image = jax.random.normal(k_img, (B, C, H, W), jnp.float32)          # NCHW
    input_ids = jax.random.randint(k_ids, (B, S), 0, VOCAB, jnp.int32)
    attention_mask = jnp.array([[1, 1, 1, 1, 1, 0, 0, 0],
                                [1, 1, 1, 1, 1, 1, 1, 0]], jnp.float32)  # [B, S]
    params = init_params(k_par)
    packed = pack_params(params)

    out = vqa_forward(image, input_ids, attention_mask, packed)
    out = jax.block_until_ready(out)
    assert out.shape == (B, LABEL) and out.dtype == jnp.float32

    ref = vqa_reference(image, input_ids, attention_mask, params)
    assert jnp.allclose(out, ref, atol=5e-4, rtol=5e-3), (out, ref)
    print("KERNEL_OK")
</pallas_src>

<mosaic_0001>
module attributes {stable_mosaic.version = 11 : i64} {
  func.func @vqa_kernel(%arg0: memref<2x4x256xf32, #tpu.memory_space<vmem>>, %arg1: memref<2x8xi32, #tpu.memory_space<vmem>>, %arg2: memref<2x8xf32, #tpu.memory_space<vmem>>, %arg3: memref<224x128xf32, #tpu.memory_space<vmem>>, %arg4: memref<2x128xf32, #tpu.memory_space<vmem>>) attributes {dimension_semantics = [], scalar_prefetch = 0 : i64, scratch_operands = 0 : i64, tpu.core_type = #tpu.core_type<tc>} {
    %c0 = arith.constant 0 : index
    %c0_0 = arith.constant 0 : index
    %c0_1 = arith.constant 0 : index
    %0 = vector.load %arg0[%c0, %c0_0, %c0_1] : memref<2x4x256xf32, #tpu.memory_space<vmem>>, vector<2x4x256xf32>
    %cst = arith.constant dense<0.000000e+00> : vector<2x4xf32>
    %1 = vector.multi_reduction <add>, %0, %cst [2] : vector<2x4x256xf32> to vector<2x4xf32>
    %c0_2 = arith.constant 0 : index
    %c0_3 = arith.constant 0 : index
    %2 = vector.load %arg1[%c0_2, %c0_3] : memref<2x8xi32, #tpu.memory_space<vmem>>, vector<2x8xi32>
    %c0_4 = arith.constant 0 : index
    %c0_5 = arith.constant 0 : index
    %3 = vector.load %arg2[%c0_4, %c0_5] : memref<2x8xf32, #tpu.memory_space<vmem>>, vector<2x8xf32>
    %4 = tpu.iota {dimensions = array<i32: 2>} : vector<2x8x100xi32>
    %5 = vector.shape_cast %2 : vector<2x8xi32> to vector<2x8x1xi32>
    %6 = vector.broadcast %5 : vector<2x8x1xi32> to vector<2x8x100xi32>
    %7 = arith.cmpi eq, %6, %4 : vector<2x8x100xi32>
    %8 = arith.extui %7 : vector<2x8x100xi1> to vector<2x8x100xi32>
    %9 = arith.sitofp %8 : vector<2x8x100xi32> to vector<2x8x100xf32>
    %10 = vector.shape_cast %3 : vector<2x8xf32> to vector<2x8x1xf32>
    %11 = vector.broadcast %10 : vector<2x8x1xf32> to vector<2x8x100xf32>
    %12 = arith.mulf %9, %11 : vector<2x8x100xf32>
    %cst_6 = arith.constant dense<0.000000e+00> : vector<2x100xf32>
    %13 = vector.multi_reduction <add>, %12, %cst_6 [1] : vector<2x8x100xf32> to vector<2x100xf32>
    %c120 = arith.constant 120 : index
    %c0_7 = arith.constant 0 : index
    %14 = vector.load %arg3[%c120, %c0_7] : memref<224x128xf32, #tpu.memory_space<vmem>>, vector<100x32xf32>
    %cst_8 = arith.constant dense<0.000000e+00> : vector<2x32xf32>
    %15 = tpu.matmul %13, %14, %cst_8 {dimension_numbers = #tpu.dot_dimension_numbers<[1], [0], [0], [1], [0, 0, 1, 1], [], []>} : vector<2x100xf32>, vector<100x32xf32>, vector<2x32xf32> -> vector<2x32xf32>
    %cst_9 = arith.constant dense<0.000000e+00> : vector<2xf32>
    %16 = vector.multi_reduction <add>, %3, %cst_9 [1] : vector<2x8xf32> to vector<2xf32>
    %17 = vector.shape_cast %16 : vector<2xf32> to vector<2x1xf32>
    %cst_10 = arith.constant 9.99999971E-10 : f32
    %18 = vector.broadcast %cst_10 : f32 to vector<2x1xf32>
    %19 = arith.maximumf %17, %18 : vector<2x1xf32>
    %20 = vector.broadcast %19 : vector<2x1xf32> to vector<2x32xf32>
    %21 = arith.divf %15, %20 : vector<2x32xf32>
    %22 = arith.mulf %21, %21 : vector<2x32xf32>
    %cst_11 = arith.constant dense<0.000000e+00> : vector<2xf32>
    %23 = vector.multi_reduction <add>, %22, %cst_11 [1] : vector<2x32xf32> to vector<2xf32>
    %24 = vector.shape_cast %23 : vector<2xf32> to vector<2x1xf32>
    %25 = math.sqrt %24 : vector<2x1xf32>
    %cst_12 = arith.constant 9.99999996E-13 : f32
    %26 = vector.broadcast %cst_12 : f32 to vector<2x1xf32>
    %27 = arith.maximumf %25, %26 : vector<2x1xf32>
    %28 = vector.broadcast %27 : vector<2x1xf32> to vector<2x32xf32>
    %29 = arith.divf %21, %28 : vector<2x32xf32>
    %c0_13 = arith.constant 0 : index
    %c0_14 = arith.constant 0 : index
    %30 = vector.load %arg3[%c0_13, %c0_14] : memref<224x128xf32, #tpu.memory_space<vmem>>, vector<4x64xf32>
    %c16 = arith.constant 16 : index
    %c0_15 = arith.constant 0 : index
    %31 = vector.load %arg3[%c16, %c0_15] : memref<224x128xf32, #tpu.memory_space<vmem>>, vector<32x64xf32>
    %c8 = arith.constant 8 : index
    %c0_16 = arith.constant 0 : index
    %32 = vector.load %arg3[%c8, %c0_16] : memref<224x128xf32, #tpu.memory_space<vmem>>, vector<1x64xf32>
    %c48 = arith.constant 48 : index
    %c0_17 = arith.constant 0 : index
    %33 = vector.load %arg3[%c48, %c0_17] : memref<224x128xf32, #tpu.memory_space<vmem>>, vector<64x128xf32>
    %c112 = arith.constant 112 : index
    %c0_18 = arith.constant 0 : index
    %34 = vector.load %arg3[%c112, %c0_18] : memref<224x128xf32, #tpu.memory_space<vmem>>, vector<1x128xf32>
    %cst_19 = arith.constant dense<0.000000e+00> : vector<2x64xf32>
    %35 = tpu.matmul %1, %30, %cst_19 {dimension_numbers = #tpu.dot_dimension_numbers<[1], [0], [0], [1], [0, 0, 1, 1], [], []>} : vector<2x4xf32>, vector<4x64xf32>, vector<2x64xf32> -> vector<2x64xf32>
    %cst_20 = arith.constant dense<0.000000e+00> : vector<2x64xf32>
    %36 = tpu.matmul %29, %31, %cst_20 {dimension_numbers = #tpu.dot_dimension_numbers<[1], [0], [0], [1], [0, 0, 1, 1], [], []>} : vector<2x32xf32>, vector<32x64xf32>, vector<2x64xf32> -> vector<2x64xf32>
    %37 = arith.addf %35, %36 : vector<2x64xf32>
    %38 = vector.broadcast %32 : vector<1x64xf32> to vector<2x64xf32>
    %39 = arith.addf %37, %38 : vector<2x64xf32>
    %cst_21 = arith.constant 0.000000e+00 : f32
    %40 = vector.broadcast %cst_21 : f32 to vector<2x64xf32>
    %41 = arith.maximumf %39, %40 : vector<2x64xf32>
    %cst_22 = arith.constant dense<0.000000e+00> : vector<2x128xf32>
    %42 = tpu.matmul %41, %33, %cst_22 {dimension_numbers = #tpu.dot_dimension_numbers<[1], [0], [0], [1], [0, 0, 1, 1], [], []>} : vector<2x64xf32>, vector<64x128xf32>, vector<2x128xf32> -> vector<2x128xf32>
    %43 = vector.broadcast %34 : vector<1x128xf32> to vector<2x128xf32>
    %44 = arith.addf %42, %43 : vector<2x128xf32>
    %c0_23 = arith.constant 0 : index
    %c0_24 = arith.constant 0 : index
    %45 = vector.load %arg4[%c0_23, %c0_24] : memref<2x128xf32, #tpu.memory_space<vmem>>, vector<2x128xf32>
    tpu.vector_store %arg4[%c0_23, %c0_24], %44 {strides = array<i32>} : memref<2x128xf32, #tpu.memory_space<vmem>>, vector<2x128xf32>,
    return
  }
}

</mosaic_0001>

<llo_original>
// kernel: tpu_custom_call.1
$region0: #{tpu_custom_call.1}
  #allocation0 [shape = 'u32[]', space=smem, size = 0x4, offset = 0x4, fixed_abs, tag = 'smem constant byte address 0x4 - core index']
  #allocation1 [shape = 'u32[144,128]{1,0:T(1,128)}', space=vmem, size = 0x12000, scoped, tag = 'internal scratch']
  %s0 = inlined_call_operand.hbm [shape: f32[2,4,256], index: 0, kind: input, shape index: {}]
  %s1 = inlined_call_operand.vmem [shape: s32[2,8], index: 1, kind: input, shape index: {}]
  %s2 = inlined_call_operand.vmem [shape: f32[2,8], index: 2, kind: input, shape index: {}]
  %s3 = inlined_call_operand.hbm [shape: f32[224,128], index: 3, kind: input, shape index: {}]
  %s4 = inlined_call_operand.hbm [shape: f32[2,128], index: 4, kind: output, shape index: {}]
  %s5 = sld [smem:[#allocation0]]
  $region34: #{tpu_custom_call.1} parent=0
    _
  %s7 = ssub.s32 1, %s5
  %s8 = scalar_select 0, %s7, %s5
  $region1: #{tpu_custom_call.1} parent=0
    #allocation2 [shape = 'u8[8192]{0}', space=vmem, size = 0x2000, scoped, tag = 'input window, operand 0, single buffered']
    #allocation3 [shape = 's32[1]{0}', space=sflag, size = 0x4, scoped, tag = 'scoped memory for tpu_custom_call.1']
    #allocation4 [shape = 's32[1]{0}', space=sflag, size = 0x4, scoped, tag = 'scoped memory for tpu_custom_call.1']
    #allocation5 [shape = 'u8[114688]{0}', space=vmem, size = 0x1c000, scoped, tag = 'input window, operand 3, single buffered']
    #allocation6 [shape = 's32[1]{0}', space=sflag, size = 0x4, scoped, tag = 'scoped memory for tpu_custom_call.1']
    #allocation7 [shape = 'u8[1024]{0}', space=vmem, size = 0x400, scoped, tag = 'output window, operand 0, single buffered']
    %9 = vsyncpa [#allocation3], 0
    %10 = vsyncpa [#allocation6], 0
    %11 = vsyncpa [#allocation4], 0
    // Predicated region
    $region2: #{tpu_custom_call.1} parent=1 // pred_check
      _
    $region3: #{tpu_custom_call.1} parent=1 // pred_check_branch
      %13 = sbr.rel (0) target = $region5
    $region4: #{tpu_custom_call.1} parent=1 // pred_region
      %s15 = ssub.s32 256, 256
      %16 = vsyncadd [#allocation3], %s15
      %s17 = sshll.u32 [#allocation2], 4
      %s18 = int_to_ptr.vmem [resolvable:$true] %s17
      %23 = dma.hbm_to_vmem [thread:$0]  %s0, 256, %s18, [#allocation3], 128, 128, 8
    $region5: #{tpu_custom_call.1} parent=1 // pred_fallthru
      _
    // Predicated region
    $region6: #{tpu_custom_call.1} parent=1 // pred_check
      _
    $region7: #{tpu_custom_call.1} parent=1 // pred_check_branch
      %25 = sbr.rel (0) target = $region9
    $region8: #{tpu_custom_call.1} parent=1 // pred_region
      _
    $region9: #{tpu_custom_call.1} parent=1 // pred_fallthru
      _
    // Predicated region
    $region10: #{tpu_custom_call.1} parent=1 // pred_check
      _
    $region11: #{tpu_custom_call.1} parent=1 // pred_check_branch
      %27 = sbr.rel (0) target = $region13
    $region12: #{tpu_custom_call.1} parent=1 // pred_region
      _
    $region13: #{tpu_custom_call.1} parent=1 // pred_fallthru
      _
    // Predicated region
    $region14: #{tpu_custom_call.1} parent=1 // pred_check
      _
    $region15: #{tpu_custom_call.1} parent=1 // pred_check_branch
      %29 = sbr.rel (0) target = $region17
    $region16: #{tpu_custom_call.1} parent=1 // pred_region
      %s31 = ssub.s32 3584, 3584
      %32 = vsyncadd [#allocation6], %s31
      %s33 = sshll.u32 [#allocation5], 4
      %s34 = int_to_ptr.vmem [resolvable:$true] %s33
      %39 = dma.hbm_to_vmem [thread:$0]  %s3, 3584, %s34, [#allocation6], 128, 128, 8
    $region17: #{tpu_custom_call.1} parent=1 // pred_fallthru
      _
    // Predicated region
    $region18: #{tpu_custom_call.1} parent=1 // pred_check
      _
    $region19: #{tpu_custom_call.1} parent=1 // pred_check_branch
      %41 = sbr.rel (0) target = $region21
    $region20: #{tpu_custom_call.1} parent=1 // pred_region
      %42 = dma.done [#allocation3], 256
    $region21: #{tpu_custom_call.1} parent=1 // pred_fallthru
      _
    // Predicated region
    $region22: #{tpu_custom_call.1} parent=1 // pred_check
      _
    $region23: #{tpu_custom_call.1} parent=1 // pred_check_branch
      %44 = sbr.rel (0) target = $region25
    $region24: #{tpu_custom_call.1} parent=1 // pred_region
      %45 = dma.done [#allocation6], 3584
    $region25: #{tpu_custom_call.1} parent=1 // pred_fallthru
      _
    %v46 = vld [vmem:[#allocation2] sm:$0xff]
    %v47 = vld [vmem:[#allocation2 + $0x8] sm:$0xff]
    %v50 = vcombine.high %v46, %v46
    %v51 = vcombine.high %v47, %v47
    %vm54 = vcmask 1043456
    %v55 = vsel %vm54, %v46, 0.0
    %v56 = vsel %vm54, %v50, 0.0
    %v57 = vadd.f32 %v55, %v56
    %58 = vadd.xlane.f32.xlu0 %v57
    %v59 = vpop.xlane.xlu0 %58
    %v60 = vsel %vm54, %v47, 0.0
    %v61 = vsel %vm54, %v51, 0.0
    %v62 = vadd.f32 %v60, %v61
    %63 = vadd.xlane.f32.xlu0 %v62
    %v64 = vpop.xlane.xlu0 %63
    %v65 = vld [vmem:[%s1] sm:$0x3]
    %v66 = vld [vmem:[%s2] sm:$0x3]
    %v67 = vlaneseq
    %v68 = vand.u32 %v67, 127
    %v69 = vlaneseq
    %v70 = vshrl.u32 %v69, 7
    %v71 = vsub.s32 0, %v70
    %v72 = vrot.slane %v65, %v71
    %74 = vbcast.lane.b32.xlu0 %v72, 256
    %v75 = vpop.permute.xlu0 %74
    %v76 = vlaneseq
    %v77 = vshrl.u32 %v76, 7
    %v78 = vsub.s32 1, %v77
    %v79 = vrot.slane %v65, %v78
    %81 = vbcast.lane.b32.xlu0 %v79, 256
    %v82 = vpop.permute.xlu0 %81
    %vm83 = vcmp.eq.s32.totalorder %v75, %v68
    %vm84 = vcmp.eq.s32.totalorder %v82, %v68
    %v85 = vsel %vm83, 1, 0
    %v86 = vsel %vm84, 1, 0
    %v87 = vcvt.s32.f32 %v85
    %v88 = vcvt.s32.f32 %v86
    %v89 = vlaneseq
    %v90 = vshrl.u32 %v89, 7
    %v91 = vsub.s32 0, %v90
    %v92 = vrot.slane %v66, %v91
    %94 = vbcast.lane.b32.xlu0 %v92, 256
    %v95 = vpop.permute.xlu0 %94
    %v96 = vlaneseq
    %v97 = vshrl.u32 %v96, 7
    %v98 = vsub.s32 1, %v97
    %v99 = vrot.slane %v66, %v98
    %101 = vbcast.lane.b32.xlu0 %v99, 256
    %v102 = vpop.permute.xlu0 %101
    %v103 = vmul.f32 %v87, %v95
    %v104 = vmul.f32 %v88, %v102
    %vm105 = vcmask 818176
    %v106 = vsel %vm105, %v103, 0.0
    %v107 = vrot.slane %v106, 4
    %v108 = vadd.f32 %v106, %v107
    %v109 = vrot.slane %v108, 2
    %v110 = vadd.f32 %v108, %v109
    %v111 = vrot.slane %v110, 1
    %v112 = vadd.f32 %v110, %v111
    %v113 = vsel %vm105, %v104, 0.0
    %v114 = vrot.slane %v113, 4
    %v115 = vadd.f32 %v113, %v114
    %v116 = vrot.slane %v115, 2
    %v117 = vadd.f32 %v115, %v116
    %v118 = vrot.slane %v117, 1
    %v119 = vadd.f32 %v117, %v118
    %v120 = vld [vmem:[#allocation5 + $0x78] sm:$0xff]
    %v121 = vld [vmem:[#allocation5 + $0x80] sm:$0xff]
    %v122 = vld [vmem:[#allocation5 + $0x88] sm:$0xff]
    %v123 = vld [vmem:[#allocation5 + $0x90] sm:$0xff]
    %v124 = vld [vmem:[#allocation5 + $0x98] sm:$0xff]
    %v125 = vld [vmem:[#allocation5 + $0xa0] sm:$0xff]
    %v126 = vld [vmem:[#allocation5 + $0xa8] sm:$0xff]
    %v127 = vld [vmem:[#allocation5 + $0xb0] sm:$0xff]
    %v128 = vld [vmem:[#allocation5 + $0xb8] sm:$0xff]
    %v129 = vld [vmem:[#allocation5 + $0xc0] sm:$0xff]
    %v130 = vld [vmem:[#allocation5 + $0xc8] sm:$0xff]
    %v131 = vld [vmem:[#allocation5 + $0xd0] sm:$0xff]
    %v132 = vld [vmem:[#allocation5 + $0xd8] sm:$0xf]
    %vm135 = vcmask 1041409
    %v136 = vsel %vm135, %v119, %v112
    %v137 = vsel %vm105, %v136, 0
    %v140 = vsel %vm54, %v132, 0
    %142 = vmatprep.subr.mxu0 0.0
    %143 = vmatpush1.msra.mxu0 %v120
    %144 = vmatprep.subr.mxu0 0.0
    %145 = vmatpush1.msra.mxu0 %v121
    %146 = vmatprep.subr.mxu0 0.0
    %147 = vmatpush1.msra.mxu0 %v122
    %148 = vmatprep.subr.mxu0 0.0
    %149 = vmatpush1.msra.mxu0 %v123
    %150 = vmatprep.subr.mxu0 0.0
    %151 = vmatpush1.msra.mxu0 %v124
    %152 = vmatprep.subr.mxu0 0.0
    %153 = vmatpush1.msra.mxu0 %v125
    %154 = vmatprep.subr.mxu0 0.0
    %155 = vmatpush1.msra.mxu0 %v126
    %156 = vmatprep.subr.mxu0 0.0
    %157 = vmatpush1.msra.mxu0 %v127
    %158 = vmatprep.subr.mxu0 0.0
    %159 = vmatpush1.msra.mxu0 %v128
    %160 = vmatprep.subr.mxu0 0.0
    %161 = vmatpush1.msra.mxu0 %v129
    %162 = vmatprep.subr.mxu0 0.0
    %163 = vmatpush1.msra.mxu0 %v130
    %164 = vmatprep.subr.mxu0 0.0
    %165 = vmatpush1.msra.mxu0 %v131
    %166 = vmatprep.subr.mxu0 0.0
    %167 = vmatpush1.msra.mxu0 %v140
    %168 = vmatprep.subr.mxu0 0.0
    %169 = vmatpush1.msra.mxu0 0.0
    %170 = vmatprep.subr.mxu0 0.0
    %171 = vmatpush1.msra.mxu0 0.0
    %172 = vmatprep.subr.mxu0 0.0
    %173 = vmatpush1.msra.mxu0 0.0
    %174 = vmatprep.subr.mxu0 0.0
    %175 = vmatpush1.msra.mxu0 0.0
    %176 = vmatprep.subr.mxu0 0.0
    %177 = vmatpush1.msra.mxu0 0.0
    %178 = vmatprep.subr.mxu0 0.0
    %179 = vmatpush1.msra.mxu0 0.0
    %180 = vmatprep.subr.mxu0 0.0
    %181 = vmatpush1.msra.mxu0 0.0
    %182 = vmatprep.subr.mxu0 0.0
    %183 = vmatpush1.msra.mxu0 0.0
    %184 = vmatprep.subr.mxu0 0.0
    %185 = vmatpush1.msra.mxu0 0.0
    %186 = vmatprep.subr.mxu0 0.0
    %187 = vmatpush1.msra.mxu0 0.0
    %188 = vmatprep.subr.mxu0 0.0
    %189 = vmatpush1.msra.mxu0 0.0
    %190 = vmatprep.subr.mxu0 0.0
    %191 = vmatpush1.msra.mxu0 0.0
    %192 = vmatprep.subr.mxu0 0.0
    %193 = vmatpush1.msra.mxu0 0.0
    %194 = vmatprep.subr.mxu0 0.0
    %195 = vmatpush1.msra.mxu0 0.0
    %196 = vmatprep.subr.mxu0 0.0
    %197 = vmatpush1.msra.mxu0 0.0
    %198 = vmatprep.subr.mxu0 0.0
    %199 = vmatpush1.msra.mxu0 0.0
    %200 = vmatprep.subr.mxu0 0.0
    %201 = vmatpush1.msra.mxu0 0.0
    %202 = vmatprep.subr.mxu0 0.0
    %203 = vmatpush1.msra.mxu0 0.0
    %204 = vmatprep.subr.mxu0 0.0
    %205 = vmatpush1.msra.mxu0 0.0
    %206 = vmatprep.mubr.f32.mxu0 0.0
    %207 = vmatmul.mubr.f32.gmra.mrb[0].mxu0 %v137
    %v208 = vpop.f32.mrb[0].mxu0
    %v209 = vadd.f32 0.0, %v208
    %v210 = vpop.f32.mrb[0].mxu0
    %211 = vdwg.mxu0
    %vm212 = vcmask 58368
    %v213 = vsel %vm212, %v66, 0.0
    %214 = vadd.xlane.f32.xlu0 %v213
    %v215 = vpop.xlane.xlu0 %214
    %v216 = vmax.f32 %v215, 1e-09
    %v217 = vrcp.pop %v216
    %v218 = vmul.f32 %v209, %v217
    %v219 = vmul.f32 %v218, %v218
    %vm220 = vcmask 254976
    %v221 = vsel %vm220, %v219, 0.0
    %222 = vadd.xlane.f32.xlu0 %v221
    %v223 = vpop.xlane.xlu0 %222
    %v224 = vrsqrt.pop %v223
    %v225 = vmul.f32 %v223, %v224
    %vm226 = vcmp.eq.f32.partialorder %v223, inf
    %v227 = vsel %vm226, %v223, %v225
    %vm228 = vcmp.eq.f32.partialorder %v223, 0.0
    %v229 = vand.u32 %v223, 2147483648
    %v230 = vsel %vm228, %v229, %v227
    %v231 = vmax.f32 %v230, 1e-12
    %v232 = vrcp.pop %v231
    %v233 = vmul.f32 %v218, %v232
    %v234 = vld [vmem:[#allocation5] sm:$0xf]
    %v235 = vld [vmem:[#allocation5 + $0x10] sm:$0xff]
    %v236 = vld [vmem:[#allocation5 + $0x18] sm:$0xff]
    %v237 = vld [vmem:[#allocation5 + $0x20] sm:$0xff]
    %v238 = vld [vmem:[#allocation5 + $0x28] sm:$0xff]
    %v239 = vld [vmem:[#allocation5 + $0x8] sm:$0x1]
    %v240 = vld [vmem:[#allocation5 + $0x30] sm:$0xff]
    %v241 = vld [vmem:[#allocation5 + $0x38] sm:$0xff]
    %v242 = vld [vmem:[#allocation5 + $0x40] sm:$0xff]
    %v243 = vld [vmem:[#allocation5 + $0x48] sm:$0xff]
    %v244 = vld [vmem:[#allocation5 + $0x50] sm:$0xff]
    %v245 = vld [vmem:[#allocation5 + $0x58] sm:$0xff]
    %v246 = vld [vmem:[#allocation5 + $0x60] sm:$0xff]
    %v247 = vld [vmem:[#allocation5 + $0x68] sm:$0xff]
    %v248 = vld [vmem:[#allocation5 + $0x70] sm:$0x1]
    %vm249 = vcmask 261120
    %v251 = vsel %vm249, %v233, 0
    %253 = vmatprep.subr.mxu0 0.0
    %254 = vmatpush1.msra.mxu0 %v235
    %255 = vmatprep.subr.mxu0 0.0
    %256 = vmatpush1.msra.mxu0 %v236
    %257 = vmatprep.subr.mxu0 0.0
    %258 = vmatpush1.msra.mxu0 %v237
    %259 = vmatprep.subr.mxu0 0.0
    %260 = vmatpush1.msra.mxu0 %v238
    %261 = vmatprep.subr.mxu0 0.0
    %262 = vmatpush1.msra.mxu0 0.0
    %263 = vmatprep.subr.mxu0 0.0
    %264 = vmatpush1.msra.mxu0 0.0
    %265 = vmatprep.subr.mxu0 0.0
    %266 = vmatpush1.msra.mxu0 0.0
    %267 = vmatprep.subr.mxu0 0.0
    %268 = vmatpush1.msra.mxu0 0.0
    %269 = vmatprep.subr.mxu0 0.0
    %270 = vmatpush1.msra.mxu0 0.0
    %271 = vmatprep.subr.mxu0 0.0
    %272 = vmatpush1.msra.mxu0 0.0
    %273 = vmatprep.subr.mxu0 0.0
    %274 = vmatpush1.msra.mxu0 0.0
    %275 = vmatprep.subr.mxu0 0.0
    %276 = vmatpush1.msra.mxu0 0.0
    %277 = vmatprep.subr.mxu0 0.0
    %278 = vmatpush1.msra.mxu0 0.0
    %279 = vmatprep.subr.mxu0 0.0
    %280 = vmatpush1.msra.mxu0 0.0
    %281 = vmatprep.subr.mxu0 0.0
    %282 = vmatpush1.msra.mxu0 0.0
    %283 = vmatprep.subr.mxu0 0.0
    %284 = vmatpush1.msra.mxu0 0.0
    %285 = vmatprep.subr.mxu0 0.0
    %286 = vmatpush1.msra.mxu0 0.0
    %287 = vmatprep.subr.mxu0 0.0
    %288 = vmatpush1.msra.mxu0 0.0
    %289 = vmatprep.subr.mxu0 0.0
    %290 = vmatpush1.msra.mxu0 0.0
    %291 = vmatprep.subr.mxu0 0.0
    %292 = vmatpush1.msra.mxu0 0.0
    %293 = vmatprep.subr.mxu0 0.0
    %294 = vmatpush1.msra.mxu0 0.0
    %295 = vmatprep.subr.mxu0 0.0
    %296 = vmatpush1.msra.mxu0 0.0
    %297 = vmatprep.subr.mxu0 0.0
    %298 = vmatpush1.msra.mxu0 0.0
    %299 = vmatprep.subr.mxu0 0.0
    %300 = vmatpush1.msra.mxu0 0.0
    %301 = vmatprep.subr.mxu0 0.0
    %302 = vmatpush1.msra.mxu0 0.0
    %303 = vmatprep.subr.mxu0 0.0
    %304 = vmatpush1.msra.mxu0 0.0
    %305 = vmatprep.subr.mxu0 0.0
    %306 = vmatpush1.msra.mxu0 0.0
    %307 = vmatprep.subr.mxu0 0.0
    %308 = vmatpush1.msra.mxu0 0.0
    %309 = vmatprep.subr.mxu0 0.0
    %310 = vmatpush1.msra.mxu0 0.0
    %311 = vmatprep.subr.mxu0 0.0
    %312 = vmatpush1.msra.mxu0 0.0
    %313 = vmatprep.subr.mxu0 0.0
    %314 = vmatpush1.msra.mxu0 0.0
    %315 = vmatprep.subr.mxu0 0.0
    %316 = vmatpush1.msra.mxu0 0.0
    %317 = vmatprep.mubr.f32.mxu0 0.0
    %318 = vmatmul.mubr.f32.gmra.mrb[0].mxu0 %v251
    %v319 = vpop.f32.mrb[0].mxu0
    %v320 = vadd.f32 0.0, %v319
    %v321 = vpop.f32.mrb[0].mxu0
    %322 = vdwg.mxu0
    %v325 = vlaneseq
    %v326 = vshrl.u32 %v325, 7
    %v327 = vsub.s32 %v68, %v326
    %v328 = vrot.slane %v59, %v327
    %v329 = vlaneseq
    %v330 = vshrl.u32 %v329, 7
    %v331 = vsub.s32 %v68, %v330
    %v332 = vrot.slane %v64, %v331
    %v333 = vsel %vm135, %v332, %v328
    %vm334 = vcmask 31744
    %v335 = vsel %vm334, %v333, 0
    %v338 = vsel %vm54, %v234, 0
    %340 = vmatprep.subr.mxu0 0.0
    %341 = vmatpush1.msra.mxu0 %v338
    %342 = vmatprep.subr.mxu0 0.0
    %343 = vmatpush1.msra.mxu0 0.0
    %344 = vmatprep.subr.mxu0 0.0
    %345 = vmatpush1.msra.mxu0 0.0
    %346 = vmatprep.subr.mxu0 0.0
    %347 = vmatpush1.msra.mxu0 0.0
    %348 = vmatprep.subr.mxu0 0.0
    %349 = vmatpush1.msra.mxu0 0.0
    %350 = vmatprep.subr.mxu0 0.0
    %351 = vmatpush1.msra.mxu0 0.0
    %352 = vmatprep.subr.mxu0 0.0
    %353 = vmatpush1.msra.mxu0 0.0
    %354 = vmatprep.subr.mxu0 0.0
    %355 = vmatpush1.msra.mxu0 0.0
    %356 = vmatprep.subr.mxu0 0.0
    %357 = vmatpush1.msra.mxu0 0.0
    %358 = vmatprep.subr.mxu0 0.0
    %359 = vmatpush1.msra.mxu0 0.0
    %360 = vmatprep.subr.mxu0 0.0
    %361 = vmatpush1.msra.mxu0 0.0
    %362 = vmatprep.subr.mxu0 0.0
    %363 = vmatpush1.msra.mxu0 0.0
    %364 = vmatprep.subr.mxu0 0.0
    %365 = vmatpush1.msra.mxu0 0.0
    %366 = vmatprep.subr.mxu0 0.0
    %367 = vmatpush1.msra.mxu0 0.0
    %368 = vmatprep.subr.mxu0 0.0
    %369 = vmatpush1.msra.mxu0 0.0
    %370 = vmatprep.subr.mxu0 0.0
    %371 = vmatpush1.msra.mxu0 0.0
    %372 = vmatprep.subr.mxu0 0.0
    %373 = vmatpush1.msra.mxu0 0.0
    %374 = vmatprep.subr.mxu0 0.0
    %375 = vmatpush1.msra.mxu0 0.0
    %376 = vmatprep.subr.mxu0 0.0
    %377 = vmatpush1.msra.mxu0 0.0
    %378 = vmatprep.subr.mxu0 0.0
    %379 = vmatpush1.msra.mxu0 0.0
    %380 = vmatprep.subr.mxu0 0.0
    %381 = vmatpush1.msra.mxu0 0.0
    %382 = vmatprep.subr.mxu0 0.0
    %383 = vmatpush1.msra.mxu0 0.0
    %384 = vmatprep.subr.mxu0 0.0
    %385 = vmatpush1.msra.mxu0 0.0
    %386 = vmatprep.subr.mxu0 0.0
    %387 = vmatpush1.msra.mxu0 0.0
    %388 = vmatprep.subr.mxu0 0.0
    %389 = vmatpush1.msra.mxu0 0.0
    %390 = vmatprep.subr.mxu0 0.0
    %391 = vmatpush1.msra.mxu0 0.0
    %392 = vmatprep.subr.mxu0 0.0
    %393 = vmatpush1.msra.mxu0 0.0
    %394 = vmatprep.subr.mxu0 0.0
    %395 = vmatpush1.msra.mxu0 0.0
    %396 = vmatprep.subr.mxu0 0.0
    %397 = vmatpush1.msra.mxu0 0.0
    %398 = vmatprep.subr.mxu0 0.0
    %399 = vmatpush1.msra.mxu0 0.0
    %400 = vmatprep.subr.mxu0 0.0
    %401 = vmatpush1.msra.mxu0 0.0
    %402 = vmatprep.subr.mxu0 0.0
    %403 = vmatpush1.msra.mxu0 0.0
    %404 = vmatprep.mubr.f32.mxu0 0.0
    %405 = vmatmul.mubr.f32.gmra.mrb[0].mxu0 %v335
    %v406 = vpop.f32.mrb[0].mxu0
    %v407 = vadd.f32 %v320, %v406
    %v408 = vpop.f32.mrb[0].mxu0
    %409 = vdwg.mxu0
    %v410 = vlaneseq
    %v411 = vshrl.u32 %v410, 7
    %v412 = vsub.s32 0, %v411
    %v413 = vrot.slane %v239, %v412
    %v414 = vadd.f32 %v407, %v413
    %v415 = vmax.f32 %v414, 0.0
    %v416 = vlaneseq
    %v417 = vshrl.u32 %v416, 7
    %v418 = vsub.s32 0, %v417
    %v419 = vrot.slane %v248, %v418
    %vm420 = vcmask 523264
    %v422 = vsel %vm420, %v415, 0
    %424 = vmatprep.subr.mxu0 0.0
    %425 = vmatpush1.msra.mxu0 %v240
    %426 = vmatprep.subr.mxu0 0.0
    %427 = vmatpush1.msra.mxu0 %v241
    %428 = vmatprep.subr.mxu0 0.0
    %429 = vmatpush1.msra.mxu0 %v242
    %430 = vmatprep.subr.mxu0 0.0
    %431 = vmatpush1.msra.mxu0 %v243
    %432 = vmatprep.subr.mxu0 0.0
    %433 = vmatpush1.msra.mxu0 %v244
    %434 = vmatprep.subr.mxu0 0.0
    %435 = vmatpush1.msra.mxu0 %v245
    %436 = vmatprep.subr.mxu0 0.0
    %437 = vmatpush1.msra.mxu0 %v246
    %438 = vmatprep.subr.mxu0 0.0
    %439 = vmatpush1.msra.mxu0 %v247
    %440 = vmatprep.subr.mxu0 0.0
    %441 = vmatpush1.msra.mxu0 0.0
    %442 = vmatprep.subr.mxu0 0.0
    %443 = vmatpush1.msra.mxu0 0.0
    %444 = vmatprep.subr.mxu0 0.0
    %445 = vmatpush1.msra.mxu0 0.0
    %446 = vmatprep.subr.mxu0 0.0
    %447 = vmatpush1.msra.mxu0 0.0
    %448 = vmatprep.subr.mxu0 0.0
    %449 = vmatpush1.msra.mxu0 0.0
    %450 = vmatprep.subr.mxu0 0.0
    %451 = vmatpush1.msra.mxu0 0.0
    %452 = vmatprep.subr.mxu0 0.0
    %453 = vmatpush1.msra.mxu0 0.0
    %454 = vmatprep.subr.mxu0 0.0
    %455 = vmatpush1.msra.mxu0 0.0
    %456 = vmatprep.subr.mxu0 0.0
    %457 = vmatpush1.msra.mxu0 0.0
    %458 = vmatprep.subr.mxu0 0.0
    %459 = vmatpush1.msra.mxu0 0.0
    %460 = vmatprep.subr.mxu0 0.0
    %461 = vmatpush1.msra.mxu0 0.0
    %462 = vmatprep.subr.mxu0 0.0
    %463 = vmatpush1.msra.mxu0 0.0
    %464 = vmatprep.subr.mxu0 0.0
    %465 = vmatpush1.msra.mxu0 0.0
    %466 = vmatprep.subr.mxu0 0.0
    %467 = vmatpush1.msra.mxu0 0.0
    %468 = vmatprep.subr.mxu0 0.0
    %469 = vmatpush1.msra.mxu0 0.0
    %470 = vmatprep.subr.mxu0 0.0
    %471 = vmatpush1.msra.mxu0 0.0
    %472 = vmatprep.subr.mxu0 0.0
    %473 = vmatpush1.msra.mxu0 0.0
    %474 = vmatprep.subr.mxu0 0.0
    %475 = vmatpush1.msra.mxu0 0.0
    %476 = vmatprep.subr.mxu0 0.0
    %477 = vmatpush1.msra.mxu0 0.0
    %478 = vmatprep.subr.mxu0 0.0
    %479 = vmatpush1.msra.mxu0 0.0
    %480 = vmatprep.subr.mxu0 0.0
    %481 = vmatpush1.msra.mxu0 0.0
    %482 = vmatprep.subr.mxu0 0.0
    %483 = vmatpush1.msra.mxu0 0.0
    %484 = vmatprep.subr.mxu0 0.0
    %485 = vmatpush1.msra.mxu0 0.0
    %486 = vmatprep.subr.mxu0 0.0
    %487 = vmatpush1.msra.mxu0 0.0
    %488 = vmatprep.mubr.f32.mxu0 0.0
    %489 = vmatmul.mubr.f32.gmra.mrb[0].mxu0 %v422
    %v490 = vpop.f32.mrb[0].mxu0
    %v491 = vadd.f32 %v419, %v490
    %v492 = vpop.f32.mrb[0].mxu0
    %493 = vdwg.mxu0
    %494 = vst [vmem:[#allocation7] sm:$0x3] %v491
    // Predicated region
    $region26: #{tpu_custom_call.1} parent=1 // pred_check
      _
    $region27: #{tpu_custom_call.1} parent=1 // pred_check_branch
      %496 = sbr.rel (0) target = $region29
    $region28: #{tpu_custom_call.1} parent=1 // pred_region
      %s498 = ssub.s32 32, 32
      %499 = vsyncadd [#allocation4], %s498
      %s501 = sshll.u32 [#allocation7], 4
      %s502 = int_to_ptr.vmem [resolvable:$true] %s501
      %504 = dma.vmem_to_hbm [thread:$0]  %s502, 32, %s4, [#allocation4]
    $region29: #{tpu_custom_call.1} parent=1 // pred_fallthru
      _
    // Predicated region
    $region30: #{tpu_custom_call.1} parent=1 // pred_check
      _
    $region31: #{tpu_custom_call.1} parent=1 // pred_check_branch
      %506 = sbr.rel (0) target = $region33
    $region32: #{tpu_custom_call.1} parent=1 // pred_region
      %507 = dma.done [#allocation4], 32
    $region33: #{tpu_custom_call.1} parent=1 // pred_fallthru
      _
    %508 = vsyncpa [#allocation3], 1
    %509 = vsyncpa [#allocation6], 1
    %510 = vsyncpa [#allocation4], 1

</llo_original>
